<compile_context>
chip_gen: v6e
topology: v6e:2x2x1
jax: 0.10.0
libtpu: 0.0.40
codegen_flags: <defaults>
</compile_context>

<pallas_src>
import math

import jax
import jax.numpy as jnp
from jax.experimental import pallas as pl
from jax.experimental.pallas import tpu as pltpu


_LANE_CANDIDATES = (8192, 4096, 2048, 1024, 512, 256, 128)
_SMALL_BYTES = 1 << 20          # below this, one block (pipelining overhead dominates)
_REAL_BLOCK_BYTES = 4 << 20     # per-ref block budget, real path
_CPLX_BLOCK_BYTES = 2 << 20     # per-ref block budget, fused complex path
_VMEM_LIMIT_BYTES = 32 << 20    # explicit scoped-VMEM limit: safe on v5e/v6e/v7x


def _relu(v):
    # Explicit zero in the input dtype (no weak-type surprises for bf16/fp16).
    return jnp.maximum(v, jnp.array(0, dtype=v.dtype))


def _sublanes(itemsize):
    """Packed sublane granularity: 8 (4B), 16 (2B), 32 (1B)."""
    return max(8, 8 * (4 // max(1, itemsize)))


def _layout_2d(shape):
    """Free (reshape-only) 2-D view of the array.

    Lane-dense wide layout when numel is a multiple of 128; otherwise keep the
    original trailing dim as the lane extent (a full-extent last dim is always
    a legal block dim) so we never pad or slice.
    """
    n = math.prod(shape) if shape else 1
    if n % 128 == 0:
        lanes = next(l for l in _LANE_CANDIDATES if n % l == 0)
        return n // lanes, lanes
    last = shape[-1] if shape else 1
    return n // last, last


def _pick_tile_r(rows, lanes, itemsize, target_block_bytes):
    """Row-tile size: sublane-aligned, divides rows when possible, and keeps
    >= 2 (normally >= 8) grid steps for pipelining / megacore sharding."""
    sub = _sublanes(itemsize)
    total_bytes = rows * lanes * itemsize
    if rows <= sub or total_bytes <= min(_SMALL_BYTES, target_block_bytes):
        return rows                                   # single full-extent block
    budget_rows = (target_block_bytes // (lanes * itemsize)) // sub * sub
    cap = max(sub, budget_rows)
    min_steps = 8 if rows >= 8 * sub else 2
    cap = min(cap, max(sub, (rows // min_steps) // sub * sub))
    for t in range(cap, sub - 1, -sub):               # prefer no ragged tail
        if rows % t == 0:
            return t
    return cap                                        # cdiv grid, masked tail block


def _compiler_params():
    return pltpu.CompilerParams(
        dimension_semantics=("parallel",),
        vmem_limit_bytes=_VMEM_LIMIT_BYTES,
    )


def _apply_real(x, act, target_block_bytes=_REAL_BLOCK_BYTES):
    """Elementwise `act` on a real array via one tiled, lane-dense Pallas kernel."""
    if x.ndim == 0 or x.size == 0:
        return act(x)
    shape, dtype = x.shape, x.dtype
    itemsize = jnp.dtype(dtype).itemsize
    rows, lanes = _layout_2d(shape)
    tile_r = _pick_tile_r(rows, lanes, itemsize, target_block_bytes)
    x2d = x.reshape(rows, lanes)                      # free row-major reshape

    def kernel(x_ref, o_ref):
        o_ref[...] = act(x_ref[...])

    spec = pl.BlockSpec((tile_r, lanes), lambda i: (i, 0))
    y2d = pl.pallas_call(
        kernel,
        out_shape=jax.ShapeDtypeStruct((rows, lanes), dtype),
        grid=(pl.cdiv(rows, tile_r),),
        in_specs=[spec],
        out_specs=spec,
        compiler_params=_compiler_params(),
        cost_estimate=pl.CostEstimate(
            flops=rows * lanes,
            transcendentals=0,
            bytes_accessed=2 * rows * lanes * itemsize,
        ),
    )(x2d)
    return y2d.reshape(shape)


def complex_activation_planar(re, im, activation=_relu,
                              target_block_bytes=_CPLX_BLOCK_BYTES):
    """Apply `activation` to planar real & imag parts with ONE fused, tiled
    Pallas kernel.  Zero wrapper traffic: takes and returns planar buffers."""
    if re.ndim == 0 or re.size == 0:
        return activation(re), activation(im)
    shape, dtype = re.shape, re.dtype
    itemsize = jnp.dtype(dtype).itemsize
    rows, lanes = _layout_2d(shape)
    tile_r = _pick_tile_r(rows, lanes, itemsize, target_block_bytes)
    re2d = re.reshape(rows, lanes)
    im2d = im.reshape(rows, lanes)

    def kernel(re_ref, im_ref, re_o_ref, im_o_ref):
        re_o_ref[...] = activation(re_ref[...])
        im_o_ref[...] = activation(im_ref[...])

    spec = pl.BlockSpec((tile_r, lanes), lambda i: (i, 0))
    re_o2d, im_o2d = pl.pallas_call(
        kernel,
        out_shape=(
            jax.ShapeDtypeStruct((rows, lanes), dtype),
            jax.ShapeDtypeStruct((rows, lanes), im.dtype),
        ),
        grid=(pl.cdiv(rows, tile_r),),
        in_specs=[spec, spec],
        out_specs=(spec, spec),
        compiler_params=_compiler_params(),
        cost_estimate=pl.CostEstimate(
            flops=2 * rows * lanes,
            transcendentals=0,
            bytes_accessed=4 * rows * lanes * itemsize,
        ),
    )(re2d, im2d)
    return re_o2d.reshape(shape), im_o2d.reshape(shape)


def complex_activation(x, activation=_relu):
    """Pallas TPU implementation of ComplexActivation(activation).forward(x)."""
    if jnp.iscomplexobj(x):
        if jnp.dtype(x.dtype).itemsize > 8:
            # TODO(synk): complex128 -> f64 kernels are poorly supported on TPU;
            # keep semantics via plain XLA.
            return jax.lax.complex(activation(jnp.real(x)), activation(jnp.imag(x)))
        # TODO(synk): jnp.real/jnp.imag/lax.complex are extra full-array HBM
        # passes around the fusion barrier (Mosaic has no complex dtype and
        # bitcast_convert_type rejects complex); callers with planar buffers
        # should use complex_activation_planar directly.
        re_out, im_out = complex_activation_planar(jnp.real(x), jnp.imag(x), activation)
        return jax.lax.complex(re_out, im_out)
    if jnp.dtype(x.dtype).itemsize > 4:
        # TODO(synk): no Pallas path for 64-bit real dtypes on TPU.
        return activation(x)
    return _apply_real(x, activation)


if __name__ == "__main__":
    key = jax.random.PRNGKey(0)
    k_re, k_im, k_real, k_big = jax.random.split(key, 4)

    # Complex NCHW input: batch=2, channels=4, spatial=16x16
    B, C, H, W = 2, 4, 16, 16
    re = jax.random.normal(k_re, (B, C, H, W), dtype=jnp.float32)
    im = jax.random.normal(k_im, (B, C, H, W), dtype=jnp.float32)
    x_complex = jax.lax.complex(re, im)

    y_complex = complex_activation(x_complex)
    jax.block_until_ready(y_complex)
    ref_complex = jax.lax.complex(jnp.maximum(re, 0.0), jnp.maximum(im, 0.0))
    assert y_complex.shape == x_complex.shape
    assert y_complex.dtype == x_complex.dtype
    assert jnp.allclose(y_complex.real, ref_complex.real)
    assert jnp.allclose(y_complex.imag, ref_complex.imag)

    # Planar (zero-wrapper-cost) complex path
    re_p, im_p = complex_activation_planar(re, im)
    jax.block_until_ready(re_p)
    assert jnp.allclose(re_p, jnp.maximum(re, 0.0))
    assert jnp.allclose(im_p, jnp.maximum(im, 0.0))

    # Real-input path
    x_real = jax.random.normal(k_real, (B, C, H, W), dtype=jnp.float32)
    y_real = complex_activation(x_real)
    jax.block_until_ready(y_real)
    assert jnp.allclose(y_real, jnp.maximum(x_real, 0.0))

    # Real-input path, bf16 (exercises dtype-aware sublane tiling)
    x_bf16 = x_real.astype(jnp.bfloat16)
    y_bf16 = complex_activation(x_bf16)
    jax.block_until_ready(y_bf16)
    assert y_bf16.dtype == jnp.bfloat16
    assert jnp.allclose(y_bf16.astype(jnp.float32),
                        jnp.maximum(x_bf16, 0).astype(jnp.float32))

    # Ragged element count (not a multiple of 128): no pad/slice, trailing dim
    # becomes the lane extent.
    x_ragged = jax.random.normal(k_big, (3, 5, 37, 33), dtype=jnp.float32)
    y_ragged = complex_activation(x_ragged)
    jax.block_until_ready(y_ragged)
    assert jnp.allclose(y_ragged, jnp.maximum(x_ragged, 0.0))

    # Force a multi-block grid (small block budget) to exercise the pipelined path.
    x_tiled = jax.random.normal(k_big, (128, 1024), dtype=jnp.float32)
    y_tiled = _apply_real(x_tiled, _relu, target_block_bytes=1 << 15)
    jax.block_until_ready(y_tiled)
    assert jnp.allclose(y_tiled, jnp.maximum(x_tiled, 0.0))

    re_t, im_t = complex_activation_planar(x_tiled, -x_tiled,
                                           target_block_bytes=1 << 15)
    jax.block_until_ready(re_t)
    assert jnp.allclose(re_t, jnp.maximum(x_tiled, 0.0))
    assert jnp.allclose(im_t, jnp.maximum(-x_tiled, 0.0))

    print("KERNEL_OK")
</pallas_src>

<mosaic_0001>
module attributes {stable_mosaic.version = 11 : i64} {
  func.func @kernel(%arg0: i32, %arg1: memref<1x2048xf32, #tpu.memory_space<vmem>>, %arg2: memref<1x2048xf32, #tpu.memory_space<vmem>>, %arg3: memref<1x2048xf32, #tpu.memory_space<vmem>>, %arg4: memref<1x2048xf32, #tpu.memory_space<vmem>>) attributes {dimension_semantics = [#tpu.dimension_semantics<parallel>], iteration_bounds = array<i64: 1>, scalar_prefetch = 0 : i64, scratch_operands = 0 : i64, tpu.core_type = #tpu.core_type<tc>, window_params = [{transform_indices = @transform_0, window_bounds = array<i64: 1, 2048>}, {transform_indices = @transform_1, window_bounds = array<i64: 1, 2048>}, {transform_indices = @transform_2, window_bounds = array<i64: 1, 2048>}, {transform_indices = @transform_3, window_bounds = array<i64: 1, 2048>}]} {
    %c0 = arith.constant 0 : index
    %c0_0 = arith.constant 0 : index
    %0 = vector.load %arg1[%c0, %c0_0] : memref<1x2048xf32, #tpu.memory_space<vmem>>, vector<1x2048xf32>
    %cst = arith.constant 0.000000e+00 : f32
    %1 = vector.broadcast %cst : f32 to vector<1x2048xf32>
    %2 = arith.maximumf %0, %1 : vector<1x2048xf32>
    %c0_1 = arith.constant 0 : index
    %c0_2 = arith.constant 0 : index
    %3 = vector.load %arg3[%c0_1, %c0_2] : memref<1x2048xf32, #tpu.memory_space<vmem>>, vector<1x2048xf32>
    tpu.vector_store %arg3[%c0_1, %c0_2], %2 {strides = array<i32>} : memref<1x2048xf32, #tpu.memory_space<vmem>>, vector<1x2048xf32>,
    %c0_3 = arith.constant 0 : index
    %c0_4 = arith.constant 0 : index
    %4 = vector.load %arg2[%c0_3, %c0_4] : memref<1x2048xf32, #tpu.memory_space<vmem>>, vector<1x2048xf32>
    %cst_5 = arith.constant 0.000000e+00 : f32
    %5 = vector.broadcast %cst_5 : f32 to vector<1x2048xf32>
    %6 = arith.maximumf %4, %5 : vector<1x2048xf32>
    %c0_6 = arith.constant 0 : index
    %c0_7 = arith.constant 0 : index
    %7 = vector.load %arg4[%c0_6, %c0_7] : memref<1x2048xf32, #tpu.memory_space<vmem>>, vector<1x2048xf32>
    tpu.vector_store %arg4[%c0_6, %c0_7], %6 {strides = array<i32>} : memref<1x2048xf32, #tpu.memory_space<vmem>>, vector<1x2048xf32>,
    return
  }
  func.func @transform_0(%arg0: i32) -> (i32, i32) {
    %c0_i32 = arith.constant 0 : i32
    %c0_i32_0 = arith.constant 0 : i32
    return %arg0, %c0_i32 : i32, i32
  }
  func.func @transform_1(%arg0: i32) -> (i32, i32) {
    %c0_i32 = arith.constant 0 : i32
    %c0_i32_0 = arith.constant 0 : i32
    return %arg0, %c0_i32 : i32, i32
  }
  func.func @transform_2(%arg0: i32) -> (i32, i32) {
    %c0_i32 = arith.constant 0 : i32
    %c0_i32_0 = arith.constant 0 : i32
    return %arg0, %c0_i32 : i32, i32
  }
  func.func @transform_3(%arg0: i32) -> (i32, i32) {
    %c0_i32 = arith.constant 0 : i32
    %c0_i32_0 = arith.constant 0 : i32
    return %arg0, %c0_i32 : i32, i32
  }
}

</mosaic_0001>

<llo_original>
// kernel: tpu_custom_call.1
$region0: #{tpu_custom_call.1}
  #allocation0 [shape = 'u32[]', space=smem, size = 0x4, offset = 0x4, fixed_abs, tag = 'smem constant byte address 0x4 - core index']
  #allocation1 [shape = 'u32[144,128]{1,0:T(1,128)}', space=vmem, size = 0x12000, scoped, tag = 'internal scratch']
  %s0 = inlined_call_operand.hbm [shape: f32[1,2048], index: 0, kind: input, shape index: {}]
  %s1 = inlined_call_operand.hbm [shape: f32[1,2048], index: 1, kind: input, shape index: {}]
  %s2 = inlined_call_operand.hbm [shape: f32[1,2048], index: 2, kind: output, shape index: {0}]
  %s3 = inlined_call_operand.hbm [shape: f32[1,2048], index: 3, kind: output, shape index: {1}]
  %4 = xla_tuple %s2, %s3
  %s5 = sld [smem:[#allocation0]]
  $region34: #{tpu_custom_call.1} parent=0
    _
  %s7 = ssub.s32 1, %s5
  %s8 = scalar_select 0, %s7, %s5
  $region1: #{tpu_custom_call.1} parent=0
    #allocation2 [shape = 'u8[8192]{0}', space=vmem, size = 0x2000, scoped, tag = 'input window, operand 0, single buffered']
    #allocation3 [shape = 's32[1]{0}', space=sflag, size = 0x4, scoped, tag = 'scoped memory for tpu_custom_call.1']
    #allocation4 [shape = 's32[1]{0}', space=sflag, size = 0x4, scoped, tag = 'scoped memory for tpu_custom_call.1']
    #allocation5 [shape = 'u8[8192]{0}', space=vmem, size = 0x2000, scoped, tag = 'input window, operand 1, single buffered']
    #allocation6 [shape = 's32[1]{0}', space=sflag, size = 0x4, scoped, tag = 'scoped memory for tpu_custom_call.1']
    #allocation7 [shape = 'u8[8192]{0}', space=vmem, size = 0x2000, scoped, tag = 'output window, operand 0, single buffered']
    #allocation8 [shape = 'u8[8192]{0}', space=vmem, size = 0x2000, scoped, tag = 'output window, operand 1, single buffered']
    #allocation9 [shape = 's32[1]{0}', space=sflag, size = 0x4, scoped, tag = 'scoped memory for tpu_custom_call.1']
    %9 = vsyncpa [#allocation3], 0
    %10 = vsyncpa [#allocation6], 0
    %11 = vsyncpa [#allocation4], 0
    %12 = vsyncpa [#allocation9], 0
    // Predicated region
    $region2: #{tpu_custom_call.1} parent=1 // pred_check
      _
    $region3: #{tpu_custom_call.1} parent=1 // pred_check_branch
      %14 = sbr.rel (0) target = $region5
    $region4: #{tpu_custom_call.1} parent=1 // pred_region
      %s16 = ssub.s32 256, 256
      %17 = vsyncadd [#allocation3], %s16
      %s19 = sshll.u32 [#allocation2], 4
      %s20 = int_to_ptr.vmem [resolvable:$true] %s19
      %22 = dma.hbm_to_vmem [thread:$0]  %s0, 256, %s20, [#allocation3]
    $region5: #{tpu_custom_call.1} parent=1 // pred_fallthru
      _
    // Predicated region
    $region6: #{tpu_custom_call.1} parent=1 // pred_check
      _
    $region7: #{tpu_custom_call.1} parent=1 // pred_check_branch
      %24 = sbr.rel (0) target = $region9
    $region8: #{tpu_custom_call.1} parent=1 // pred_region
      %s26 = ssub.s32 256, 256
      %27 = vsyncadd [#allocation6], %s26
      %s29 = sshll.u32 [#allocation5], 4
      %s30 = int_to_ptr.vmem [resolvable:$true] %s29
      %32 = dma.hbm_to_vmem [thread:$0]  %s1, 256, %s30, [#allocation6]
    $region9: #{tpu_custom_call.1} parent=1 // pred_fallthru
      _
    // Predicated region
    $region10: #{tpu_custom_call.1} parent=1 // pred_check
      _
    $region11: #{tpu_custom_call.1} parent=1 // pred_check_branch
      %34 = sbr.rel (0) target = $region13
    $region12: #{tpu_custom_call.1} parent=1 // pred_region
      %35 = dma.done [#allocation3], 256
    $region13: #{tpu_custom_call.1} parent=1 // pred_fallthru
      _
    // Predicated region
    $region14: #{tpu_custom_call.1} parent=1 // pred_check
      _
    $region15: #{tpu_custom_call.1} parent=1 // pred_check_branch
      %37 = sbr.rel (0) target = $region17
    $region16: #{tpu_custom_call.1} parent=1 // pred_region
      %38 = dma.done [#allocation6], 256
    $region17: #{tpu_custom_call.1} parent=1 // pred_fallthru
      _
    %v39 = vld [vmem:[#allocation2] sm:$0xff]
    %v40 = vld [vmem:[#allocation2 + $0x8] sm:$0xff]
    %v41 = vmax.f32 %v39, 0.0
    %v42 = vmax.f32 %v40, 0.0
    %43 = vst [vmem:[#allocation7] sm:$0xff] %v41
    %44 = vst [vmem:[#allocation7 + $0x8] sm:$0xff] %v42
    %v45 = vld [vmem:[#allocation5] sm:$0xff]
    %v46 = vld [vmem:[#allocation5 + $0x8] sm:$0xff]
    %v47 = vmax.f32 %v45, 0.0
    %v48 = vmax.f32 %v46, 0.0
    %49 = vst [vmem:[#allocation8] sm:$0xff] %v47
    %50 = vst [vmem:[#allocation8 + $0x8] sm:$0xff] %v48
    // Predicated region
    $region18: #{tpu_custom_call.1} parent=1 // pred_check
      _
    $region19: #{tpu_custom_call.1} parent=1 // pred_check_branch
      %52 = sbr.rel (0) target = $region21
    $region20: #{tpu_custom_call.1} parent=1 // pred_region
      %s54 = ssub.s32 256, 256
      %55 = vsyncadd [#allocation4], %s54
      %s57 = sshll.u32 [#allocation7], 4
      %s58 = int_to_ptr.vmem [resolvable:$true] %s57
      %60 = dma.vmem_to_hbm [thread:$0]  %s58, 256, %s2, [#allocation4]
    $region21: #{tpu_custom_call.1} parent=1 // pred_fallthru
      _
    // Predicated region
    $region22: #{tpu_custom_call.1} parent=1 // pred_check
      _
    $region23: #{tpu_custom_call.1} parent=1 // pred_check_branch
      %62 = sbr.rel (0) target = $region25
    $region24: #{tpu_custom_call.1} parent=1 // pred_region
      %s64 = ssub.s32 256, 256
      %65 = vsyncadd [#allocation9], %s64
      %s67 = sshll.u32 [#allocation8], 4
      %s68 = int_to_ptr.vmem [resolvable:$true] %s67
      %70 = dma.vmem_to_hbm [thread:$0]  %s68, 256, %s3, [#allocation9]
    $region25: #{tpu_custom_call.1} parent=1 // pred_fallthru
      _
    // Predicated region
    $region26: #{tpu_custom_call.1} parent=1 // pred_check
      _
    $region27: #{tpu_custom_call.1} parent=1 // pred_check_branch
      %72 = sbr.rel (0) target = $region29
    $region28: #{tpu_custom_call.1} parent=1 // pred_region
      %73 = dma.done [#allocation4], 256
    $region29: #{tpu_custom_call.1} parent=1 // pred_fallthru
      _
    // Predicated region
    $region30: #{tpu_custom_call.1} parent=1 // pred_check
      _
    $region31: #{tpu_custom_call.1} parent=1 // pred_check_branch
      %75 = sbr.rel (0) target = $region33
    $region32: #{tpu_custom_call.1} parent=1 // pred_region
      %76 = dma.done [#allocation9], 256
    $region33: #{tpu_custom_call.1} parent=1 // pred_fallthru
      _
    %77 = vsyncpa [#allocation3], 1
    %78 = vsyncpa [#allocation6], 1
    %79 = vsyncpa [#allocation4], 1
    %80 = vsyncpa [#allocation9], 1

</llo_original>
